<compile_context>
chip_gen: v7x
topology: tpu7x:2x2x1
jax: 0.10.0
libtpu: 0.0.40
codegen_flags: <defaults>
</compile_context>

<pallas_src>
import functools
import math

import jax
import jax.numpy as jnp
from jax.experimental import pallas as pl
from jax.experimental.pallas import tpu as pltpu

_LN2 = math.log(2.0)


def _jsd_kernel(p_ref, q_ref, out_ref, *, total_rows, total_cols,
                mask_rows, mask_cols):
    p = p_ref[...].astype(jnp.float32)
    q = q_ref[...].astype(jnp.float32)

    # log m = log(0.5*(p+q)) = log(p+q) - ln2, so per element:
    #   p*(log p - log m) + q*(log q - log m)
    #     = p*(log p - log s) + q*(log q - log s) + s*ln2,   s = p + q
    # NaN for p==0 or q==0 matches PyTorch KLDivLoss(log_target=True).
    s = p + q
    log_s = jnp.log(s)
    contrib = (p * (jnp.log(p) - log_s)
               + q * (jnp.log(q) - log_s)
               + s * jnp.float32(_LN2))

    # Mask the RESULT (not the inputs) on ragged edge tiles: a single select,
    # and robust to whatever data sits in the out-of-bounds part of the block.
    if mask_rows or mask_cols:
        tm, tn = p_ref.shape
        valid = None
        if mask_rows:
            i = pl.program_id(0)
            row_ids = jax.lax.broadcasted_iota(jnp.int32, (tm, tn), 0) + i * tm
            valid = row_ids < total_rows
        if mask_cols:
            j = pl.program_id(1)
            col_ids = jax.lax.broadcasted_iota(jnp.int32, (tm, tn), 1) + j * tn
            cmask = col_ids < total_cols
            valid = cmask if valid is None else jnp.logical_and(valid, cmask)
        contrib = jnp.where(valid, contrib, 0.0)

    # One partial per grid block, broadcast into a full (8,128) vreg so the
    # store is a dense, unmasked vst. Cross-block reduction happens in the
    # wrapper (also improves summation accuracy for huge class counts).
    out_ref[...] = jnp.broadcast_to(jnp.sum(contrib), out_ref.shape)


def _round_up(x, m):
    return ((x + m - 1) // m) * m


def _choose_tiles(B, C, dtype):
    itemsize = jnp.dtype(dtype).itemsize
    # Native sublane packing: 8 for 32-bit, 16 for 16-bit, 32 for 8-bit.
    sublane = {4: 8, 2: 16, 1: 32}.get(itemsize, 8)
    target_bytes = 8 * 1024 * 1024   # per-input tile (2 in x 2 bufs = 32 MiB)

    # Lane (class) tile: full C when modest, otherwise a multiple of 128.
    TN = C if C <= 8192 else 8192

    # Row (batch) tile: fill the per-input byte budget, rounded to the native
    # sublane multiple; use the full batch when it already fits.
    tm = max(sublane, target_bytes // (max(TN, 1) * itemsize))
    TM = B if tm >= B else max(sublane, (tm // sublane) * sublane)

    # Ensure at least 2 grid blocks (both axes are "parallel") so v7x's two
    # TensorCores both get work for the typical small-B / large-C loss shape.
    if pl.cdiv(B, TM) * pl.cdiv(C, TN) < 2:
        if C >= 256:
            TN = _round_up(pl.cdiv(C, 2), 128)       # < C, multiple of 128
        elif B >= 2 * sublane:
            TM = _round_up(pl.cdiv(B, 2), sublane)   # < B, sublane multiple
    return TM, TN


def jsd(p, q, tile_m=None, tile_n=None):
    """Jensen-Shannon divergence between row-wise distributions p and q.

    p, q: [B, C] probability tensors (rows sum to 1). bf16 inputs are
    supported (compute is done in f32 inside the kernel).
    Returns a scalar float32 (matching torch's 'batchmean' reduction).
    """
    assert p.shape == q.shape and p.ndim == 2
    B, C = p.shape
    if tile_m is None or tile_n is None:
        TM, TN = _choose_tiles(B, C, p.dtype)
    else:
        TM, TN = min(tile_m, B), min(tile_n, C)
    GM = pl.cdiv(B, TM)
    GN = pl.cdiv(C, TN)

    kernel = functools.partial(
        _jsd_kernel,
        total_rows=B, total_cols=C,
        mask_rows=(B % TM != 0), mask_cols=(C % TN != 0))

    itemsize = jnp.dtype(p.dtype).itemsize
    bytes_accessed = 2 * p.size * itemsize + GM * GN * 8 * 128 * 4

    partials = pl.pallas_call(
        kernel,
        out_shape=jax.ShapeDtypeStruct((GM, GN, 8, 128), jnp.float32),
        grid_spec=pltpu.PrefetchScalarGridSpec(
            num_scalar_prefetch=0,
            grid=(GM, GN),
            in_specs=[pl.BlockSpec((TM, TN), lambda i, j: (i, j)),
                      pl.BlockSpec((TM, TN), lambda i, j: (i, j))],
            out_specs=pl.BlockSpec((1, 1, 8, 128), lambda i, j: (i, j, 0, 0)),
        ),
        compiler_params=pltpu.CompilerParams(
            dimension_semantics=("parallel", "parallel"),
            vmem_limit_bytes=48 * 1024 * 1024),
        cost_estimate=pl.CostEstimate(
            flops=9 * B * C,
            transcendentals=3 * B * C,
            bytes_accessed=bytes_accessed),
    )(p, q)

    # Every lane/sublane of a block holds the same partial; take one per block.
    total = jnp.sum(partials[:, :, 0, 0])
    # 'batchmean' uses the FULL batch size, not the tile height.
    return 0.5 * total / jnp.float32(B)


def _jsd_ref(p, q):
    # Pure-JAX reference of the PyTorch forward.
    p = p.astype(jnp.float32)
    q = q.astype(jnp.float32)
    m = jnp.log(0.5 * (p + q))
    b = p.shape[0]
    kl_pm = jnp.sum(p * (jnp.log(p) - m)) / b
    kl_qm = jnp.sum(q * (jnp.log(q) - m)) / b
    return 0.5 * (kl_pm + kl_qm)


if __name__ == "__main__":
    key = jax.random.PRNGKey(0)
    k1, k2, k3, k4, k5, k6 = jax.random.split(key, 6)

    # Small [batch, classes] case implied by the loss usage.
    B, C = 8, 32
    p = jax.nn.softmax(jax.random.normal(k1, (B, C), dtype=jnp.float32), axis=-1)
    q = jax.nn.softmax(jax.random.normal(k2, (B, C), dtype=jnp.float32), axis=-1)
    out = jax.block_until_ready(jsd(p, q))
    ref = jax.block_until_ready(_jsd_ref(p, q))
    assert jnp.allclose(out, ref, rtol=1e-5, atol=1e-6), (out, ref)

    # Default auto-tiling path (class axis split into two "parallel" blocks).
    B2, C2 = 16, 1536
    p2 = jax.nn.softmax(jax.random.normal(k3, (B2, C2), dtype=jnp.float32), axis=-1)
    q2 = jax.nn.softmax(jax.random.normal(k4, (B2, C2), dtype=jnp.float32), axis=-1)
    out2 = jax.block_until_ready(jsd(p2, q2))
    ref2 = jax.block_until_ready(_jsd_ref(p2, q2))
    assert jnp.allclose(out2, ref2, rtol=1e-4, atol=1e-6), (out2, ref2)

    # Explicit small tiles: ragged rows AND ragged cols exercise the masked path.
    B3, C3 = 13, 1500
    p3 = jax.nn.softmax(jax.random.normal(k5, (B3, C3), dtype=jnp.float32), axis=-1)
    q3 = jax.nn.softmax(jax.random.normal(k6, (B3, C3), dtype=jnp.float32), axis=-1)
    out3 = jax.block_until_ready(jsd(p3, q3, tile_m=8, tile_n=256))
    ref3 = jax.block_until_ready(_jsd_ref(p3, q3))
    assert jnp.allclose(out3, ref3, rtol=1e-4, atol=1e-6), (out3, ref3)

    print("KERNEL_OK")
</pallas_src>

<mosaic_0001>
module attributes {stable_mosaic.version = 11 : i64} {
  func.func @_jsd_kernel(%arg0: i32, %arg1: i32, %arg2: memref<8x32xf32, #tpu.memory_space<vmem>>, %arg3: memref<8x32xf32, #tpu.memory_space<vmem>>, %arg4: memref<1x1x8x128xf32, #tpu.memory_space<vmem>>) attributes {dimension_semantics = [#tpu.dimension_semantics<parallel>, #tpu.dimension_semantics<parallel>], iteration_bounds = array<i64: 1, 1>, scalar_prefetch = 0 : i64, scratch_operands = 0 : i64, tpu.core_type = #tpu.core_type<tc>, window_params = [{transform_indices = @transform_0, window_bounds = array<i64: 8, 32>}, {transform_indices = @transform_1, window_bounds = array<i64: 8, 32>}, {transform_indices = @transform_2, window_bounds = array<i64: 1, 1, 8, 128>}]} {
    %c0 = arith.constant 0 : index
    %c0_0 = arith.constant 0 : index
    %0 = vector.load %arg2[%c0, %c0_0] : memref<8x32xf32, #tpu.memory_space<vmem>>, vector<8x32xf32>
    %c0_1 = arith.constant 0 : index
    %c0_2 = arith.constant 0 : index
    %1 = vector.load %arg3[%c0_1, %c0_2] : memref<8x32xf32, #tpu.memory_space<vmem>>, vector<8x32xf32>
    %2 = arith.addf %0, %1 : vector<8x32xf32>
    %3 = math.log %2 : vector<8x32xf32>
    %4 = math.log %0 : vector<8x32xf32>
    %5 = arith.subf %4, %3 : vector<8x32xf32>
    %6 = arith.mulf %0, %5 : vector<8x32xf32>
    %7 = math.log %1 : vector<8x32xf32>
    %8 = arith.subf %7, %3 : vector<8x32xf32>
    %9 = arith.mulf %1, %8 : vector<8x32xf32>
    %10 = arith.addf %6, %9 : vector<8x32xf32>
    %cst = arith.constant 0.693147182 : f32
    %11 = vector.broadcast %cst : f32 to vector<8x32xf32>
    %12 = arith.mulf %2, %11 : vector<8x32xf32>
    %13 = arith.addf %10, %12 : vector<8x32xf32>
    %14 = vector.shape_cast %13 : vector<8x32xf32> to vector<1x8x32xf32>
    %cst_3 = arith.constant dense<0.000000e+00> : vector<1xf32>
    %15 = vector.multi_reduction <add>, %14, %cst_3 [1, 2] : vector<1x8x32xf32> to vector<1xf32>
    %16 = vector.shape_cast %15 : vector<1xf32> to vector<1x1x1xf32>
    %17 = vector.extract %16[0, 0, 0] : f32 from vector<1x1x1xf32>
    %18 = vector.broadcast %17 : f32 to vector<1x1x8x128xf32>
    %c0_4 = arith.constant 0 : index
    %c0_5 = arith.constant 0 : index
    %c0_6 = arith.constant 0 : index
    %c0_7 = arith.constant 0 : index
    %19 = vector.load %arg4[%c0_4, %c0_5, %c0_6, %c0_7] : memref<1x1x8x128xf32, #tpu.memory_space<vmem>>, vector<1x1x8x128xf32>
    tpu.vector_store %arg4[%c0_4, %c0_5, %c0_6, %c0_7], %18 {strides = array<i32>} : memref<1x1x8x128xf32, #tpu.memory_space<vmem>>, vector<1x1x8x128xf32>,
    return
  }
  func.func @transform_0(%arg0: i32, %arg1: i32) -> (i32, i32) {
    %c0_i32 = arith.constant 0 : i32
    return %arg0, %arg1 : i32, i32
  }
  func.func @transform_1(%arg0: i32, %arg1: i32) -> (i32, i32) {
    %c0_i32 = arith.constant 0 : i32
    return %arg0, %arg1 : i32, i32
  }
  func.func @transform_2(%arg0: i32, %arg1: i32) -> (i32, i32, i32, i32) {
    %c0_i32 = arith.constant 0 : i32
    %c0_i32_0 = arith.constant 0 : i32
    %c0_i32_1 = arith.constant 0 : i32
    return %arg0, %arg1, %c0_i32, %c0_i32_0 : i32, i32, i32, i32
  }
}

</mosaic_0001>

<llo_original>
// kernel: tpu_custom_call.1
$region0: #{tpu_custom_call.1}
  #allocation0 [shape = 'u32[]', space=smem, size = 0x4, offset = 0x4, fixed_abs, tag = 'smem constant byte address 0x4 - core index']
  #allocation1 [shape = 'u32[144,128]{1,0:T(1,128)}', space=vmem, size = 0x12000, scoped, tag = 'internal scratch']
  %s0 = inlined_call_operand.hbm [shape: f32[8,32], index: 0, kind: input, shape index: {}]
  %s1 = inlined_call_operand.hbm [shape: f32[8,32], index: 1, kind: input, shape index: {}]
  %s2 = inlined_call_operand.hbm [shape: f32[1,1,8,128], index: 2, kind: output, shape index: {}]
  %s3 = sld [smem:[#allocation0]]
  $region26: #{tpu_custom_call.1} parent=0
    _
  %s5 = ssub.s32 1, %s3
  %s6 = scalar_select 0, %s5, %s3
  $region1: #{tpu_custom_call.1} parent=0
    #allocation2 [shape = 'u8[4096]{0}', space=vmem, size = 0x1000, scoped, tag = 'input window, operand 0, single buffered']
    #allocation3 [shape = 's32[1]{0}', space=sflag, size = 0x4, scoped, tag = 'scoped memory for tpu_custom_call.1']
    #allocation4 [shape = 's32[1]{0}', space=sflag, size = 0x4, scoped, tag = 'scoped memory for tpu_custom_call.1']
    #allocation5 [shape = 'u8[4096]{0}', space=vmem, size = 0x1000, scoped, tag = 'input window, operand 1, single buffered']
    #allocation6 [shape = 's32[1]{0}', space=sflag, size = 0x4, scoped, tag = 'scoped memory for tpu_custom_call.1']
    #allocation7 [shape = 'u8[4096]{0}', space=vmem, size = 0x1000, scoped, tag = 'output window, operand 0, single buffered']
    %7 = vsyncpa [#allocation3], 0
    %8 = vsyncpa [#allocation6], 0
    %9 = vsyncpa [#allocation4], 0
    // Predicated region
    $region2: #{tpu_custom_call.1} parent=1 // pred_check
      _
    $region3: #{tpu_custom_call.1} parent=1 // pred_check_branch
      %11 = sbr.rel (0) target = $region5
    $region4: #{tpu_custom_call.1} parent=1 // pred_region
      %s13 = ssub.s32 128, 128
      %14 = vsyncadd [#allocation3], %s13
      %s16 = sshll.u32 [#allocation2], 4
      %s17 = int_to_ptr.vmem [resolvable:$true] %s16
      %19 = dma.hbm_to_vmem [thread:$0]  %s0, 128, %s17, [#allocation3]
    $region5: #{tpu_custom_call.1} parent=1 // pred_fallthru
      _
    // Predicated region
    $region6: #{tpu_custom_call.1} parent=1 // pred_check
      _
    $region7: #{tpu_custom_call.1} parent=1 // pred_check_branch
      %21 = sbr.rel (0) target = $region9
    $region8: #{tpu_custom_call.1} parent=1 // pred_region
      %s23 = ssub.s32 128, 128
      %24 = vsyncadd [#allocation6], %s23
      %s26 = sshll.u32 [#allocation5], 4
      %s27 = int_to_ptr.vmem [resolvable:$true] %s26
      %29 = dma.hbm_to_vmem [thread:$0]  %s1, 128, %s27, [#allocation6]
    $region9: #{tpu_custom_call.1} parent=1 // pred_fallthru
      _
    // Predicated region
    $region10: #{tpu_custom_call.1} parent=1 // pred_check
      _
    $region11: #{tpu_custom_call.1} parent=1 // pred_check_branch
      %31 = sbr.rel (0) target = $region13
    $region12: #{tpu_custom_call.1} parent=1 // pred_region
      %32 = dma.done [#allocation3], 128
    $region13: #{tpu_custom_call.1} parent=1 // pred_fallthru
      _
    // Predicated region
    $region14: #{tpu_custom_call.1} parent=1 // pred_check
      _
    $region15: #{tpu_custom_call.1} parent=1 // pred_check_branch
      %34 = sbr.rel (0) target = $region17
    $region16: #{tpu_custom_call.1} parent=1 // pred_region
      %35 = dma.done [#allocation6], 128
    $region17: #{tpu_custom_call.1} parent=1 // pred_fallthru
      _
    %v36 = vld [vmem:[#allocation2] sm:$0xff]
    %v37 = vld [vmem:[#allocation5] sm:$0xff]
    %v38 = vadd.f32 %v36, %v37
    %v39 = vlog2.pop %v38
    %v40 = vmul.f32 %v39, 0.6931472
    %v41 = vlog2.pop %v36
    %v42 = vmul.f32 %v41, 0.6931472
    %v43 = vsub.f32 %v42, %v40
    %v44 = vmul.f32 %v36, %v43
    %v45 = vlog2.pop %v37
    %v46 = vmul.f32 %v45, 0.6931472
    %v47 = vsub.f32 %v46, %v40
    %v48 = vmul.f32 %v37, %v47
    %v49 = vadd.f32 %v44, %v48
    %v50 = vmul.f32 %v38, 0.6931472
    %v51 = vadd.f32 %v49, %v50
    %vm52 = vcmask 261120
    %v53 = vsel %vm52, %v51, 0.0
    %54 = vadd.xlane.f32.xlu0 %v53
    %v55 = vpop.xlane.xlu0 %54
    %v56 = vrot.slane %v55, 4
    %v57 = vadd.f32 %v55, %v56
    %v58 = vrot.slane %v57, 2
    %v59 = vadd.f32 %v57, %v58
    %v60 = vrot.slane %v59, 1
    %v61 = vadd.f32 %v59, %v60
    %s62 = vtos %v61
    %v63 = vstv %s62
    %64 = vst [vmem:[#allocation7] sm:$0xff] %v63
    // Predicated region
    $region18: #{tpu_custom_call.1} parent=1 // pred_check
      _
    $region19: #{tpu_custom_call.1} parent=1 // pred_check_branch
      %66 = sbr.rel (0) target = $region21
    $region20: #{tpu_custom_call.1} parent=1 // pred_region
      %s68 = ssub.s32 128, 128
      %69 = vsyncadd [#allocation4], %s68
      %s71 = sshll.u32 [#allocation7], 4
      %s72 = int_to_ptr.vmem [resolvable:$true] %s71
      %74 = dma.vmem_to_hbm [thread:$0]  %s72, 128, %s2, [#allocation4]
    $region21: #{tpu_custom_call.1} parent=1 // pred_fallthru
      _
    // Predicated region
    $region22: #{tpu_custom_call.1} parent=1 // pred_check
      _
    $region23: #{tpu_custom_call.1} parent=1 // pred_check_branch
      %76 = sbr.rel (0) target = $region25
    $region24: #{tpu_custom_call.1} parent=1 // pred_region
      %77 = dma.done [#allocation4], 128
    $region25: #{tpu_custom_call.1} parent=1 // pred_fallthru
      _
    %78 = vsyncpa [#allocation3], 1
    %79 = vsyncpa [#allocation6], 1
    %80 = vsyncpa [#allocation4], 1

</llo_original>
